<compile_context>
chip_gen: v6e
topology: v6e:2x2x1
jax: 0.10.0
libtpu: 0.0.40
codegen_flags: <defaults>
</compile_context>

<pallas_src>
import functools

import jax
import jax.numpy as jnp
import numpy as np
from jax import lax
from jax.experimental import pallas as pl
from jax.experimental.pallas import tpu as pltpu


def _triple_kernel(x_ref, w1_ref, b1_ref, w2_ref, b2_ref, out_ref, lhs_ref,
                   *, T, K, Cpk):
    # x_ref:   (Mblk, D)          input rows (whole batch elements, time-minor)
    # w1_ref:  (K*D, Cpk+H) bf16  fused per-tap weights: cols [0:C]=linear conv,
    #                             cols [Cpk:]=BN-folded mlp conv1, zeros elsewhere
    # b1_ref:  (1, Cpk+H)   f32   fused biases
    # w2_ref:  (H, Cpk)     bf16  pointwise mlp conv2, placed in cols [C:2C]
    # b2_ref:  (1, Cpk)     f32
    # out_ref: (Mblk, Cpk)        packed output: lanes [0:C]=linear, [C:2C]=mlp
    # lhs_ref: (Mblk, K*D)        im2col scratch (x dtype)
    M, D = x_ref.shape
    pad = K // 2

    # ---- Build the im2col LHS: column block k holds x shifted by (k - pad) rows.
    # The shift is a whole-slab offset load/store; rows whose shift crosses a batch
    # element boundary (or the 'same' zero padding) are masked with an iota test,
    # so the work is fully vectorized over all batch elements in the block.
    for k in range(K):
        d = k - pad
        c0, c1 = k * D, (k + 1) * D
        if d == 0:
            lhs_ref[:, c0:c1] = x_ref[...]
            continue
        nfull = M - abs(d)
        if nfull <= 0:
            lhs_ref[:, c0:c1] = jnp.zeros((M, D), lhs_ref.dtype)
            continue
        lo_dst, lo_src = max(0, -d), max(0, d)
        t = (lax.broadcasted_iota(jnp.int32, (nfull, 1), 0) + lo_dst) % T
        valid = jnp.logical_and(t + d >= 0, t + d < T)
        slab = x_ref[lo_src:lo_src + nfull, :]
        lhs_ref[lo_dst:lo_dst + nfull, c0:c1] = jnp.where(valid, slab, 0).astype(
            lhs_ref.dtype)
        # Rows the shifted slab cannot reach are the conv's zero padding.
        if lo_dst > 0:
            lhs_ref[:lo_dst, c0:c1] = jnp.zeros((lo_dst, D), lhs_ref.dtype)
        if lo_dst + nfull < M:
            lhs_ref[lo_dst + nfull:, c0:c1] = jnp.zeros(
                (M - lo_dst - nfull, D), lhs_ref.dtype)

    # ---- One deep MXU matmul: all K taps of BOTH conv heads, f32 accumulation.
    lhs = lhs_ref[...].astype(jnp.bfloat16)                               # (M, K*D)
    z = jnp.dot(lhs, w1_ref[...],
                preferred_element_type=jnp.float32) + b1_ref[...]         # (M, Cpk+H)

    # 'mlp' head: BN already folded into conv1; ReLU then pointwise conv2 on the MXU.
    h = jnp.maximum(z[:, Cpk:], 0.0).astype(jnp.bfloat16)                 # (M, H)
    mlp = jnp.dot(h, w2_ref[...], preferred_element_type=jnp.float32) + b2_ref[...]

    # Packed lane-dense store: z's lanes [0:C] carry the 'linear' head (its other
    # lanes are exactly zero), mlp's lanes [C:2C] carry the 'mlp' head (its other
    # lanes are exactly zero), so one full-width unmasked store covers both heads.
    out_ref[...] = (z[:, :Cpk] + mlp).astype(out_ref.dtype)


def _round_up(v, m):
    return (v + m - 1) // m * m


def _pick_bblk(B, T, rows_target=512):
    """Whole batch elements per block; Mblk multiple of 8 (or full extent)."""
    cands = [b for b in range(1, B + 1)
             if B % b == 0 and ((b * T) % 8 == 0 or b == B)]
    fit = [b for b in cands if b * T <= max(rows_target, T)]
    bblk = max(fit) if fit else min(cands)
    # v7x has two TensorCores: prefer >=2 (even) grid steps, but only when each
    # block keeps >=256 rows -- on single-TC v5e/v6e the grid is a serial loop and
    # tiny blocks are pure per-step overhead.
    if B // bblk == 1:
        half = [b for b in cands
                if b < B and (B // b) % 2 == 0 and b * T >= 256]
        if half:
            bblk = max(half)
    return bblk


def triple_classifier_forward(x, params, lens=None, only=("linear", "mlp"),
                              out_dtype=jnp.float32):
    """JAX/Pallas equivalent of TripleClassifier.forward for the conv heads.

    x: (B, T, ...) -> flattened to (B, T, D) like x.contiguous().view(B, T, -1)
    Returns {'linear': (B*T, 1, C), 'mlp': (B*T, 1, C)} (subset per `only`).
    """
    # TODO(synk): 'lstm' predictor (RNNStack + Linear) is an external recurrent module
    # with no definition in this spec; it is not implemented here.
    del lens
    if only is None:
        only = ("linear", "mlp")
    B, T = x.shape[0], x.shape[1]
    x3 = x.reshape(B, T, -1)
    D = x3.shape[-1]

    w_lin, b_lin = params["lin_w"], params["lin_b"]            # (C, D, K), (C,)
    C, Dw, K = w_lin.shape
    assert Dw == D and K % 2 == 1, "odd kernel_size (aggreg) expected"
    w_m1, b_m1 = params["mlp_w1"], params["mlp_b1"]            # (H, D, K), (H,)
    H = w_m1.shape[0]
    assert H % 128 == 0                                        # module fixes H=128
    gamma, beta = params["bn_gamma"], params["bn_beta"]
    mean, var, eps = params["bn_mean"], params["bn_var"], params["bn_eps"]
    w_m2, b_m2 = params["mlp_w2"], params["mlp_b2"]            # (C, H, 1), (C,)

    f32, bf16 = jnp.float32, jnp.bfloat16
    Cpk = _round_up(max(2 * C, 128), 128)       # packed lane-dense output width
    N1 = Cpk + H

    # Fold eval-mode BatchNorm1d into the first mlp conv.
    s = gamma.astype(f32) / jnp.sqrt(var.astype(f32) + eps)
    w_m1f = w_m1.astype(f32) * s[:, None, None]
    b_m1f = (b_m1.astype(f32) - mean.astype(f32)) * s + beta.astype(f32)

    # Fused first-dot weight, taps along the contraction dim (rows k*D..(k+1)*D):
    #   cols [0:C]   -> 'linear' conv, cols [C:Cpk]  -> zero,
    #   cols [Cpk:]  -> BN-folded mlp conv1.
    w_lin_t = jnp.transpose(w_lin.astype(f32), (2, 1, 0))              # (K, D, C)
    w_m1_t = jnp.transpose(w_m1f, (2, 1, 0))                           # (K, D, H)
    w1 = jnp.zeros((K, D, N1), f32)
    w1 = w1.at[:, :, :C].set(w_lin_t).at[:, :, Cpk:].set(w_m1_t)
    w1_2d = w1.reshape(K * D, N1).astype(bf16)
    b1 = (jnp.zeros((N1,), f32).at[:C].set(b_lin.astype(f32))
          .at[Cpk:].set(b_m1f)).reshape(1, N1)

    # Pointwise mlp conv2, shifted into lanes [C:2C] of the packed output.
    w2 = (jnp.zeros((H, Cpk), f32)
          .at[:, C:2 * C].set(jnp.transpose(w_m2[:, :, 0].astype(f32)))).astype(bf16)
    b2 = (jnp.zeros((Cpk,), f32).at[C:2 * C].set(b_m2.astype(f32))).reshape(1, Cpk)

    bblk = _pick_bblk(B, T)
    nb = B // bblk
    Mblk = bblk * T
    x2d = x3.reshape(B * T, D)                 # metadata-only reshape, no HBM copy

    # VMEM budget from the actual footprint (double-buffered I/O blocks + resident
    # weights + im2col scratch + value intermediates), with 2x headroom.
    isz_x = x2d.dtype.itemsize
    isz_o = jnp.dtype(out_dtype).itemsize
    bytes_io = Mblk * D * isz_x + Mblk * Cpk * isz_o
    bytes_w = (K * D * N1 + H * Cpk) * 2 + (N1 + Cpk) * 4
    bytes_scr = Mblk * K * D * isz_x
    bytes_val = Mblk * N1 * 4 + Mblk * Cpk * 4 + Mblk * H * 2
    vmem_limit = int(min(max(2 * (2 * (bytes_io + bytes_w) + bytes_scr + bytes_val),
                             4 << 20), 32 << 20))

    kernel = functools.partial(_triple_kernel, T=T, K=K, Cpk=Cpk)
    out = pl.pallas_call(
        kernel,
        out_shape=jax.ShapeDtypeStruct((B * T, Cpk), out_dtype),
        grid_spec=pltpu.PrefetchScalarGridSpec(
            num_scalar_prefetch=0,
            grid=(nb,),
            in_specs=[
                # NOTE: if D ever becomes large, consider pipeline_mode=pl.Buffered(3).
                pl.BlockSpec((Mblk, D), lambda i: (i, 0)),
                # Constant index maps: weights stay resident, not re-DMAed per step.
                pl.BlockSpec((K * D, N1), lambda i: (0, 0)),
                pl.BlockSpec((1, N1), lambda i: (0, 0)),
                pl.BlockSpec((H, Cpk), lambda i: (0, 0)),
                pl.BlockSpec((1, Cpk), lambda i: (0, 0)),
            ],
            out_specs=pl.BlockSpec((Mblk, Cpk), lambda i: (i, 0)),
            scratch_shapes=[pltpu.VMEM((Mblk, K * D), x2d.dtype)],
        ),
        compiler_params=pltpu.CompilerParams(
            dimension_semantics=("parallel",),
            vmem_limit_bytes=vmem_limit,
        ),
    )(x2d, w1_2d, b1, w2, b2)

    preds = {}
    if "linear" in only:
        preds["linear"] = out[:, :C].reshape(B * T, 1, C)
    if "mlp" in only:
        preds["mlp"] = out[:, C:2 * C].reshape(B * T, 1, C)
    return preds


# ----------------------------- pure-JAX reference -----------------------------

def _conv1d_same_ref(x, w, b):
    # x: (B, T, D) f32; w: (Cout, D, K) PyTorch Conv1d layout; padding = K//2.
    B, T, _ = x.shape
    Cout, _, K = w.shape
    pad = K // 2
    xp = jnp.pad(x, ((0, 0), (pad, pad), (0, 0)))
    out = jnp.zeros((B, T, Cout), jnp.float32) + b[None, None, :]
    for k in range(K):
        out = out + jnp.einsum("btd,cd->btc", xp[:, k:k + T, :], w[:, :, k])
    return out


def _reference_forward(x, params):
    B, T = x.shape[0], x.shape[1]
    xf = x.reshape(B, T, -1).astype(jnp.float32)
    C = params["lin_w"].shape[0]
    y_lin = _conv1d_same_ref(xf, params["lin_w"].astype(jnp.float32),
                             params["lin_b"].astype(jnp.float32))
    h = _conv1d_same_ref(xf, params["mlp_w1"].astype(jnp.float32),
                         params["mlp_b1"].astype(jnp.float32))
    h = ((h - params["bn_mean"]) / jnp.sqrt(params["bn_var"] + params["bn_eps"])
         * params["bn_gamma"] + params["bn_beta"])
    h = jnp.maximum(h, 0.0)
    y_mlp = jnp.einsum("bth,ch->btc", h, params["mlp_w2"][:, :, 0]) + params["mlp_b2"]
    return {"linear": y_lin.reshape(-1, 1, C), "mlp": y_mlp.reshape(-1, 1, C)}


if __name__ == "__main__":
    # Small, module-consistent shapes: batch=2, seq=8, input_dim=32,
    # output_dim (classes)=16, aggreg (kernel_size)=3, mlp hidden=128 (fixed).
    B, T, D, C, K, H = 2, 8, 32, 16, 3, 128

    key = jax.random.PRNGKey(0)
    ks = jax.random.split(key, 11)

    # Input as a 4-D tensor (B, T, 1, D); forward flattens trailing dims like
    # x.contiguous().view(B, T, -1).
    x = jax.random.normal(ks[0], (B, T, 1, D), dtype=jnp.float32)

    bound1 = 1.0 / np.sqrt(D * K)   # Conv1d(D, *, K) default init bound
    bound2 = 1.0 / np.sqrt(H)       # Conv1d(H, C, 1) default init bound
    params = {
        "lin_w": jax.random.uniform(ks[1], (C, D, K), jnp.float32, -bound1, bound1),
        "lin_b": jax.random.uniform(ks[2], (C,), jnp.float32, -bound1, bound1),
        "mlp_w1": jax.random.uniform(ks[3], (H, D, K), jnp.float32, -bound1, bound1),
        "mlp_b1": jax.random.uniform(ks[4], (H,), jnp.float32, -bound1, bound1),
        "bn_gamma": jax.random.uniform(ks[5], (H,), jnp.float32, 0.8, 1.2),
        "bn_beta": jax.random.uniform(ks[6], (H,), jnp.float32, -0.1, 0.1),
        "bn_mean": 0.1 * jax.random.normal(ks[7], (H,), jnp.float32),
        "bn_var": jax.random.uniform(ks[8], (H,), jnp.float32, 0.5, 1.5),
        "bn_eps": 1e-5,
        "mlp_w2": jax.random.uniform(ks[9], (C, H, 1), jnp.float32, -bound2, bound2),
        "mlp_b2": jax.random.uniform(ks[10], (C,), jnp.float32, -bound2, bound2),
    }

    preds = triple_classifier_forward(x, params)
    preds = jax.block_until_ready(preds)

    ref = _reference_forward(x, params)
    for name in ("linear", "mlp"):
        assert preds[name].shape == (B * T, 1, C)
        # bf16 MXU inputs with f32 accumulation vs. an all-f32 reference.
        np.testing.assert_allclose(np.asarray(preds[name]), np.asarray(ref[name]),
                                   rtol=2e-2, atol=2e-2)

    print("KERNEL_OK")
</pallas_src>

<mosaic_0001>
module attributes {stable_mosaic.version = 11 : i64} {
  func.func @_triple_kernel(%arg0: i32, %arg1: memref<16x32xf32, #tpu.memory_space<vmem>>, %arg2: memref<96x256xbf16, #tpu.memory_space<vmem>>, %arg3: memref<1x256xf32, #tpu.memory_space<vmem>>, %arg4: memref<128x128xbf16, #tpu.memory_space<vmem>>, %arg5: memref<1x128xf32, #tpu.memory_space<vmem>>, %arg6: memref<16x128xf32, #tpu.memory_space<vmem>>, %arg7: memref<16x96xf32, #tpu.memory_space<vmem>>) attributes {dimension_semantics = [#tpu.dimension_semantics<parallel>], iteration_bounds = array<i64: 1>, scalar_prefetch = 0 : i64, scratch_operands = 1 : i64, tpu.core_type = #tpu.core_type<tc>, window_params = [{transform_indices = @transform_0, window_bounds = array<i64: 16, 32>}, {pipeline_mode = #tpu.pipeline_mode<synchronous>, transform_indices = @transform_1, window_bounds = array<i64: 96, 256>}, {pipeline_mode = #tpu.pipeline_mode<synchronous>, transform_indices = @transform_2, window_bounds = array<i64: 1, 256>}, {pipeline_mode = #tpu.pipeline_mode<synchronous>, transform_indices = @transform_3, window_bounds = array<i64: 128, 128>}, {pipeline_mode = #tpu.pipeline_mode<synchronous>, transform_indices = @transform_4, window_bounds = array<i64: 1, 128>}, {transform_indices = @transform_5, window_bounds = array<i64: 16, 128>}]} {
    %0 = tpu.iota {dimensions = array<i32: 0>} : vector<15x1xi32>
    %c1_i32 = arith.constant 1 : i32
    %1 = vector.broadcast %c1_i32 : i32 to vector<15x1xi32>
    %2 = arith.addi %0, %1 : vector<15x1xi32>
    %c8_i32 = arith.constant 8 : i32
    %c0_i32 = arith.constant 0 : i32
    %3 = arith.cmpi eq, %c8_i32, %c0_i32 : i32
    %c1_i32_0 = arith.constant 1 : i32
    %4 = arith.select %3, %c1_i32_0, %c8_i32 : i32
    %5 = vector.broadcast %4 : i32 to vector<15x1xi32>
    %6 = arith.remsi %2, %5 : vector<15x1xi32>
    %c0_i32_1 = arith.constant 0 : i32
    %7 = vector.broadcast %c0_i32_1 : i32 to vector<15x1xi32>
    %8 = arith.cmpi ne, %6, %7 : vector<15x1xi32>
    %c0_i32_2 = arith.constant 0 : i32
    %9 = vector.broadcast %c0_i32_2 : i32 to vector<15x1xi32>
    %10 = arith.cmpi slt, %6, %9 : vector<15x1xi32>
    %c0_i32_3 = arith.constant 0 : i32
    %11 = arith.cmpi slt, %4, %c0_i32_3 : i32
    %12 = vector.broadcast %11 : i1 to vector<15x1xi1>
    %13 = vector.broadcast %12 : vector<15x1xi1> to vector<15x1xi1>
    %14 = arith.xori %10, %13 : vector<15x1xi1>
    %15 = arith.andi %14, %8 : vector<15x1xi1>
    %16 = vector.broadcast %4 : i32 to vector<15x1xi32>
    %17 = arith.addi %6, %16 : vector<15x1xi32>
    %18 = arith.select %15, %17, %6 : vector<15x1xi1>, vector<15x1xi32>
    %c-1_i32 = arith.constant -1 : i32
    %19 = vector.broadcast %c-1_i32 : i32 to vector<15x1xi32>
    %20 = arith.addi %18, %19 : vector<15x1xi32>
    %c0_i32_4 = arith.constant 0 : i32
    %21 = vector.broadcast %c0_i32_4 : i32 to vector<15x1xi32>
    %22 = arith.cmpi sge, %20, %21 : vector<15x1xi32>
    %c-1_i32_5 = arith.constant -1 : i32
    %23 = vector.broadcast %c-1_i32_5 : i32 to vector<15x1xi32>
    %24 = arith.addi %18, %23 : vector<15x1xi32>
    %c8_i32_6 = arith.constant 8 : i32
    %25 = vector.broadcast %c8_i32_6 : i32 to vector<15x1xi32>
    %26 = arith.cmpi slt, %24, %25 : vector<15x1xi32>
    %27 = arith.andi %22, %26 : vector<15x1xi1>
    %c0 = arith.constant 0 : index
    %c0_7 = arith.constant 0 : index
    %28 = vector.load %arg1[%c0, %c0_7] : memref<16x32xf32, #tpu.memory_space<vmem>>, vector<15x32xf32>
    %c0_i32_8 = arith.constant 0 : i32
    %29 = arith.sitofp %c0_i32_8 : i32 to f32
    %30 = vector.shape_cast %27 : vector<15x1xi1> to vector<15x1xi1>
    %31 = vector.broadcast %30 : vector<15x1xi1> to vector<15x32xi1>
    %32 = vector.broadcast %29 : f32 to vector<15x32xf32>
    %33 = arith.select %31, %28, %32 : vector<15x32xi1>, vector<15x32xf32>
    %c1 = arith.constant 1 : index
    %c0_9 = arith.constant 0 : index
    %34 = vector.load %arg7[%c1, %c0_9] : memref<16x96xf32, #tpu.memory_space<vmem>>, vector<15x32xf32>
    tpu.vector_store %arg7[%c1, %c0_9], %33 {strides = array<i32>} : memref<16x96xf32, #tpu.memory_space<vmem>>, vector<15x32xf32>,
    %cst = arith.constant 0.000000e+00 : f32
    %35 = vector.broadcast %cst : f32 to vector<1x32xf32>
    %c0_10 = arith.constant 0 : index
    %c0_11 = arith.constant 0 : index
    %36 = vector.load %arg7[%c0_10, %c0_11] : memref<16x96xf32, #tpu.memory_space<vmem>>, vector<1x32xf32>
    tpu.vector_store %arg7[%c0_10, %c0_11], %35 {strides = array<i32>} : memref<16x96xf32, #tpu.memory_space<vmem>>, vector<1x32xf32>,
    %c0_12 = arith.constant 0 : index
    %c0_13 = arith.constant 0 : index
    %37 = vector.load %arg1[%c0_12, %c0_13] : memref<16x32xf32, #tpu.memory_space<vmem>>, vector<16x32xf32>
    %c0_14 = arith.constant 0 : index
    %c32 = arith.constant 32 : index
    %38 = vector.load %arg7[%c0_14, %c32] : memref<16x96xf32, #tpu.memory_space<vmem>>, vector<16x32xf32>
    tpu.vector_store %arg7[%c0_14, %c32], %37 {strides = array<i32>} : memref<16x96xf32, #tpu.memory_space<vmem>>, vector<16x32xf32>,
    %39 = tpu.iota {dimensions = array<i32: 0>} : vector<15x1xi32>
    %c0_i32_15 = arith.constant 0 : i32
    %40 = vector.broadcast %c0_i32_15 : i32 to vector<15x1xi32>
    %41 = arith.addi %39, %40 : vector<15x1xi32>
    %c8_i32_16 = arith.constant 8 : i32
    %c0_i32_17 = arith.constant 0 : i32
    %42 = arith.cmpi eq, %c8_i32_16, %c0_i32_17 : i32
    %c1_i32_18 = arith.constant 1 : i32
    %43 = arith.select %42, %c1_i32_18, %c8_i32_16 : i32
    %44 = vector.broadcast %43 : i32 to vector<15x1xi32>
    %45 = arith.remsi %41, %44 : vector<15x1xi32>
    %c0_i32_19 = arith.constant 0 : i32
    %46 = vector.broadcast %c0_i32_19 : i32 to vector<15x1xi32>
    %47 = arith.cmpi ne, %45, %46 : vector<15x1xi32>
    %c0_i32_20 = arith.constant 0 : i32
    %48 = vector.broadcast %c0_i32_20 : i32 to vector<15x1xi32>
    %49 = arith.cmpi slt, %45, %48 : vector<15x1xi32>
    %c0_i32_21 = arith.constant 0 : i32
    %50 = arith.cmpi slt, %43, %c0_i32_21 : i32
    %51 = vector.broadcast %50 : i1 to vector<15x1xi1>
    %52 = vector.broadcast %51 : vector<15x1xi1> to vector<15x1xi1>
    %53 = arith.xori %49, %52 : vector<15x1xi1>
    %54 = arith.andi %53, %47 : vector<15x1xi1>
    %55 = vector.broadcast %43 : i32 to vector<15x1xi32>
    %56 = arith.addi %45, %55 : vector<15x1xi32>
    %57 = arith.select %54, %56, %45 : vector<15x1xi1>, vector<15x1xi32>
    %c1_i32_22 = arith.constant 1 : i32
    %58 = vector.broadcast %c1_i32_22 : i32 to vector<15x1xi32>
    %59 = arith.addi %57, %58 : vector<15x1xi32>
    %c0_i32_23 = arith.constant 0 : i32
    %60 = vector.broadcast %c0_i32_23 : i32 to vector<15x1xi32>
    %61 = arith.cmpi sge, %59, %60 : vector<15x1xi32>
    %c1_i32_24 = arith.constant 1 : i32
    %62 = vector.broadcast %c1_i32_24 : i32 to vector<15x1xi32>
    %63 = arith.addi %57, %62 : vector<15x1xi32>
    %c8_i32_25 = arith.constant 8 : i32
    %64 = vector.broadcast %c8_i32_25 : i32 to vector<15x1xi32>
    %65 = arith.cmpi slt, %63, %64 : vector<15x1xi32>
    %66 = arith.andi %61, %65 : vector<15x1xi1>
    %c1_26 = arith.constant 1 : index
    %c0_27 = arith.constant 0 : index
    %67 = vector.load %arg1[%c1_26, %c0_27] : memref<16x32xf32, #tpu.memory_space<vmem>>, vector<15x32xf32>
    %c0_i32_28 = arith.constant 0 : i32
    %68 = arith.sitofp %c0_i32_28 : i32 to f32
    %69 = vector.shape_cast %66 : vector<15x1xi1> to vector<15x1xi1>
    %70 = vector.broadcast %69 : vector<15x1xi1> to vector<15x32xi1>
    %71 = vector.broadcast %68 : f32 to vector<15x32xf32>
    %72 = arith.select %70, %67, %71 : vector<15x32xi1>, vector<15x32xf32>
    %c0_29 = arith.constant 0 : index
    %c64 = arith.constant 64 : index
    %73 = vector.load %arg7[%c0_29, %c64] : memref<16x96xf32, #tpu.memory_space<vmem>>, vector<15x32xf32>
    tpu.vector_store %arg7[%c0_29, %c64], %72 {strides = array<i32>} : memref<16x96xf32, #tpu.memory_space<vmem>>, vector<15x32xf32>,
    %cst_30 = arith.constant 0.000000e+00 : f32
    %74 = vector.broadcast %cst_30 : f32 to vector<1x32xf32>
    %c15 = arith.constant 15 : index
    %c64_31 = arith.constant 64 : index
    %75 = vector.load %arg7[%c15, %c64_31] : memref<16x96xf32, #tpu.memory_space<vmem>>, vector<1x32xf32>
    tpu.vector_store %arg7[%c15, %c64_31], %74 {strides = array<i32>} : memref<16x96xf32, #tpu.memory_space<vmem>>, vector<1x32xf32>,
    %c0_32 = arith.constant 0 : index
    %c0_33 = arith.constant 0 : index
    %76 = vector.load %arg7[%c0_32, %c0_33] : memref<16x96xf32, #tpu.memory_space<vmem>>, vector<16x96xf32>
    %77 = arith.truncf %76 : vector<16x96xf32> to vector<16x96xbf16>
    %c0_34 = arith.constant 0 : index
    %c0_35 = arith.constant 0 : index
    %78 = vector.load %arg2[%c0_34, %c0_35] : memref<96x256xbf16, #tpu.memory_space<vmem>>, vector<96x256xbf16>
    %cst_36 = arith.constant dense<0.000000e+00> : vector<16x256xf32>
    %79 = tpu.matmul %77, %78, %cst_36 {dimension_numbers = #tpu.dot_dimension_numbers<[1], [0], [0], [1], [0, 0, 1, 1], [], []>} : vector<16x96xbf16>, vector<96x256xbf16>, vector<16x256xf32> -> vector<16x256xf32>
    %c0_37 = arith.constant 0 : index
    %c0_38 = arith.constant 0 : index
    %80 = vector.load %arg3[%c0_37, %c0_38] : memref<1x256xf32, #tpu.memory_space<vmem>>, vector<1x256xf32>
    %81 = vector.broadcast %80 : vector<1x256xf32> to vector<16x256xf32>
    %82 = arith.addf %79, %81 : vector<16x256xf32>
    %83 = vector.extract_strided_slice %82 {offsets = [0, 128], sizes = [16, 128], strides = [1, 1]} : vector<16x256xf32> to vector<16x128xf32>
    %cst_39 = arith.constant 0.000000e+00 : f32
    %84 = vector.broadcast %cst_39 : f32 to vector<16x128xf32>
    %85 = arith.maximumf %83, %84 : vector<16x128xf32>
    %86 = arith.truncf %85 : vector<16x128xf32> to vector<16x128xbf16>
    %c0_40 = arith.constant 0 : index
    %c0_41 = arith.constant 0 : index
    %87 = vector.load %arg4[%c0_40, %c0_41] : memref<128x128xbf16, #tpu.memory_space<vmem>>, vector<128x128xbf16>
    %cst_42 = arith.constant dense<0.000000e+00> : vector<16x128xf32>
    %88 = tpu.matmul %86, %87, %cst_42 {dimension_numbers = #tpu.dot_dimension_numbers<[1], [0], [0], [1], [0, 0, 1, 1], [], []>} : vector<16x128xbf16>, vector<128x128xbf16>, vector<16x128xf32> -> vector<16x128xf32>
    %c0_43 = arith.constant 0 : index
    %c0_44 = arith.constant 0 : index
    %89 = vector.load %arg5[%c0_43, %c0_44] : memref<1x128xf32, #tpu.memory_space<vmem>>, vector<1x128xf32>
    %90 = vector.broadcast %89 : vector<1x128xf32> to vector<16x128xf32>
    %91 = arith.addf %88, %90 : vector<16x128xf32>
    %92 = vector.extract_strided_slice %82 {offsets = [0, 0], sizes = [16, 128], strides = [1, 1]} : vector<16x256xf32> to vector<16x128xf32>
    %93 = arith.addf %92, %91 : vector<16x128xf32>
    %c0_45 = arith.constant 0 : index
    %c0_46 = arith.constant 0 : index
    %94 = vector.load %arg6[%c0_45, %c0_46] : memref<16x128xf32, #tpu.memory_space<vmem>>, vector<16x128xf32>
    tpu.vector_store %arg6[%c0_45, %c0_46], %93 {strides = array<i32>} : memref<16x128xf32, #tpu.memory_space<vmem>>, vector<16x128xf32>,
    return
  }
  func.func @transform_0(%arg0: i32) -> (i32, i32) {
    %c0_i32 = arith.constant 0 : i32
    %c0_i32_0 = arith.constant 0 : i32
    return %arg0, %c0_i32 : i32, i32
  }
  func.func @transform_1(%arg0: i32) -> (i32, i32) {
    %c0_i32 = arith.constant 0 : i32
    %c0_i32_0 = arith.constant 0 : i32
    %c0_i32_1 = arith.constant 0 : i32
    return %c0_i32, %c0_i32_0 : i32, i32
  }
  func.func @transform_2(%arg0: i32) -> (i32, i32) {
    %c0_i32 = arith.constant 0 : i32
    %c0_i32_0 = arith.constant 0 : i32
    %c0_i32_1 = arith.constant 0 : i32
    return %c0_i32, %c0_i32_0 : i32, i32
  }
  func.func @transform_3(%arg0: i32) -> (i32, i32) {
    %c0_i32 = arith.constant 0 : i32
    %c0_i32_0 = arith.constant 0 : i32
    %c0_i32_1 = arith.constant 0 : i32
    return %c0_i32, %c0_i32_0 : i32, i32
  }
  func.func @transform_4(%arg0: i32) -> (i32, i32) {
    %c0_i32 = arith.constant 0 : i32
    %c0_i32_0 = arith.constant 0 : i32
    %c0_i32_1 = arith.constant 0 : i32
    return %c0_i32, %c0_i32_0 : i32, i32
  }
  func.func @transform_5(%arg0: i32) -> (i32, i32) {
    %c0_i32 = arith.constant 0 : i32
    %c0_i32_0 = arith.constant 0 : i32
    return %arg0, %c0_i32 : i32, i32
  }
}

</mosaic_0001>

<llo_original>
// kernel: tpu_custom_call.1
$region0: #{tpu_custom_call.1}
  #allocation0 [shape = 'u32[]', space=smem, size = 0x4, offset = 0x4, fixed_abs, tag = 'smem constant byte address 0x4 - core index']
  #allocation1 [shape = 'u32[144,128]{1,0:T(1,128)}', space=vmem, size = 0x12000, scoped, tag = 'internal scratch']
  #allocation2 [shape = 'f32[16,96]{1,0:T(8,128)}', space=vmem, size = 0x2000, scoped, tag = 'scratch operand']
  %s0 = inlined_call_operand.hbm [shape: f32[16,32], index: 0, kind: input, shape index: {}]
  %s1 = inlined_call_operand.hbm [shape: bf16[96,256], index: 1, kind: input, shape index: {}]
  %s2 = inlined_call_operand.vmem [shape: f32[1,256], index: 2, kind: input, shape index: {}]
  %s3 = inlined_call_operand.hbm [shape: bf16[128,128], index: 3, kind: input, shape index: {}]
  %s4 = inlined_call_operand.vmem [shape: f32[1,128], index: 4, kind: input, shape index: {}]
  %s5 = inlined_call_operand.hbm [shape: f32[16,128], index: 5, kind: output, shape index: {}]
  %s6 = sld [smem:[#allocation0]]
  $region42: #{tpu_custom_call.1} parent=0
    _
  %s8 = ssub.s32 1, %s6
  %s9 = scalar_select 0, %s8, %s6
  $region1: #{tpu_custom_call.1} parent=0
    #allocation3 [shape = 'u8[8192]{0}', space=vmem, size = 0x2000, scoped, tag = 'input window, operand 0, single buffered']
    #allocation4 [shape = 's32[1]{0}', space=sflag, size = 0x4, scoped, tag = 'scoped memory for tpu_custom_call.1']
    #allocation5 [shape = 's32[1]{0}', space=sflag, size = 0x4, scoped, tag = 'scoped memory for tpu_custom_call.1']
    #allocation6 [shape = 'u8[49152]{0}', space=vmem, size = 0xc000, scoped, tag = 'input window, operand 1, single buffered']
    #allocation7 [shape = 's32[1]{0}', space=sflag, size = 0x4, scoped, tag = 'scoped memory for tpu_custom_call.1']
    #allocation8 [shape = 'u8[32768]{0}', space=vmem, size = 0x8000, scoped, tag = 'input window, operand 3, single buffered']
    #allocation9 [shape = 'u8[8192]{0}', space=vmem, size = 0x2000, scoped, tag = 'output window, operand 0, single buffered']
    %10 = vsyncpa [#allocation4], 0
    %11 = vsyncpa [#allocation7], 0
    %12 = vsyncpa [#allocation5], 0
    // Predicated region
    $region2: #{tpu_custom_call.1} parent=1 // pred_check
      _
    $region3: #{tpu_custom_call.1} parent=1 // pred_check_branch
      %14 = sbr.rel (0) target = $region5
    $region4: #{tpu_custom_call.1} parent=1 // pred_region
      %s16 = ssub.s32 256, 256
      %17 = vsyncadd [#allocation4], %s16
      %s18 = sshll.u32 [#allocation3], 4
      %s19 = int_to_ptr.vmem [resolvable:$true] %s18
      %24 = dma.hbm_to_vmem [thread:$0]  %s0, 256, %s19, [#allocation4], 128, 128, 8
    $region5: #{tpu_custom_call.1} parent=1 // pred_fallthru
      _
    // Predicated region
    $region6: #{tpu_custom_call.1} parent=1 // pred_check
      _
    $region7: #{tpu_custom_call.1} parent=1 // pred_check_branch
      %26 = sbr.rel (0) target = $region9
    $region8: #{tpu_custom_call.1} parent=1 // pred_region
      %s28 = ssub.s32 1536, 1536
      %29 = vsyncadd [#allocation7], %s28
      %s30 = sshll.u32 [#allocation6], 4
      %s31 = int_to_ptr.vmem [resolvable:$true] %s30
      %36 = dma.hbm_to_vmem [thread:$0]  %s1, 1536, %s31, [#allocation7], 128, 128, 8
    $region9: #{tpu_custom_call.1} parent=1 // pred_fallthru
      _
    // Predicated region
    $region10: #{tpu_custom_call.1} parent=1 // pred_check
      _
    $region11: #{tpu_custom_call.1} parent=1 // pred_check_branch
      %38 = sbr.rel (0) target = $region13
    $region12: #{tpu_custom_call.1} parent=1 // pred_region
      _
    $region13: #{tpu_custom_call.1} parent=1 // pred_fallthru
      _
    // Predicated region
    $region14: #{tpu_custom_call.1} parent=1 // pred_check
      _
    $region15: #{tpu_custom_call.1} parent=1 // pred_check_branch
      %40 = sbr.rel (0) target = $region17
    $region16: #{tpu_custom_call.1} parent=1 // pred_region
      %s42 = ssub.s32 1024, 1024
      %43 = vsyncadd [#allocation7], %s42
      %s44 = sshll.u32 [#allocation8], 4
      %s45 = int_to_ptr.vmem [resolvable:$true] %s44
      %50 = dma.hbm_to_vmem [thread:$0]  %s3, 1024, %s45, [#allocation7], 64, 64, 4
    $region17: #{tpu_custom_call.1} parent=1 // pred_fallthru
      _
    // Predicated region
    $region18: #{tpu_custom_call.1} parent=1 // pred_check
      _
    $region19: #{tpu_custom_call.1} parent=1 // pred_check_branch
      %52 = sbr.rel (0) target = $region21
    $region20: #{tpu_custom_call.1} parent=1 // pred_region
      _
    $region21: #{tpu_custom_call.1} parent=1 // pred_fallthru
      _
    // Predicated region
    $region22: #{tpu_custom_call.1} parent=1 // pred_check
      _
    $region23: #{tpu_custom_call.1} parent=1 // pred_check_branch
      %54 = sbr.rel (0) target = $region25
    $region24: #{tpu_custom_call.1} parent=1 // pred_region
      %55 = dma.done [#allocation4], 256
    $region25: #{tpu_custom_call.1} parent=1 // pred_fallthru
      _
    // Predicated region
    $region26: #{tpu_custom_call.1} parent=1 // pred_check
      _
    $region27: #{tpu_custom_call.1} parent=1 // pred_check_branch
      %57 = sbr.rel (0) target = $region29
    $region28: #{tpu_custom_call.1} parent=1 // pred_region
      %58 = dma.done [#allocation7], 1536
    $region29: #{tpu_custom_call.1} parent=1 // pred_fallthru
      _
    // Predicated region
    $region30: #{tpu_custom_call.1} parent=1 // pred_check
      _
    $region31: #{tpu_custom_call.1} parent=1 // pred_check_branch
      %60 = sbr.rel (0) target = $region33
    $region32: #{tpu_custom_call.1} parent=1 // pred_region
      %61 = dma.done [#allocation7], 1024
    $region33: #{tpu_custom_call.1} parent=1 // pred_fallthru
      _
    %v63 = vlaneseq
    %v64 = vshrl.u32 %v63, 7
    %v65 = vadd.s32 %v64, 8
    %v66 = vadd.s32 %v64, 1
    %v67 = vadd.s32 %v65, 1
    %vm68 = vcmp.lt.s32.totalorder %v66, 0
    %v69 = vsub.s32 0, %v66
    %v70 = vsel %vm68, %v69, %v66
    %v71 = vshrl.u32 %v70, 3
    %v72 = vand.u32 %v70, 7
    %v73 = vsub.s32 0, %v72
    %v74 = vsel %vm68, %v73, %v72
    %vm75 = vcmp.lt.s32.totalorder %v67, 0
    %v76 = vsub.s32 0, %v67
    %v77 = vsel %vm75, %v76, %v67
    %v78 = vshrl.u32 %v77, 3
    %v79 = vand.u32 %v77, 7
    %v80 = vsub.s32 0, %v79
    %v81 = vsel %vm75, %v80, %v79
    %vm82 = vcmp.ne.s32.totalorder %v74, 0
    %vm83 = vcmp.ne.s32.totalorder %v81, 0
    %vm84 = vcmp.lt.s32.totalorder %v74, 0
    %vm85 = vcmp.lt.s32.totalorder %v81, 0
    %vm86 = vmand %vm84, %vm82
    %vm87 = vmand %vm85, %vm83
    %v88 = vadd.s32 %v74, 8
    %v89 = vadd.s32 %v81, 8
    %v90 = vsel %vm86, %v88, %v74
    %v91 = vsel %vm87, %v89, %v81
    %v92 = vadd.s32 %v90, 4294967295
    %v93 = vadd.s32 %v91, 4294967295
    %vm94 = vcmp.ge.s32.totalorder %v92, 0
    %vm95 = vcmp.ge.s32.totalorder %v93, 0
    %vm96 = vcmp.lt.s32.totalorder %v92, 8
    %vm97 = vcmp.lt.s32.totalorder %v93, 8
    %vm98 = vmand %vm94, %vm96
    %vm99 = vmand %vm95, %vm97
    %v100 = vld [vmem:[#allocation3] sm:$0xff]
    %v101 = vld [vmem:[#allocation3 + $0x8] sm:$0x7f]
    %v102 = vsel %vm98, 1, 0
    %v103 = vsel %vm99, 1, 0
    %vm104 = vcmp.eq.s32.totalorder %v102, 1
    %vm105 = vcmp.eq.s32.totalorder %v103, 1
    %v106 = vsel %vm104, %v100, 0.0
    %v107 = vsel %vm105, %v101, 0.0
    %vm108 = vcmask 261120
    %109 = vst.msk [vmem:[#allocation2 + $0x1] sm:$0xff] %vm108, %v106
    %vm110 = vcmask 260096
    %111 = vst.msk [vmem:[#allocation2 + $0x9] sm:$0x7f] %vm110, %v107
    %vm112 = vcmask 253952
    %113 = vst.msk [vmem:[#allocation2] sm:$0x1] %vm112, 0.0
    %v114 = vld [vmem:[#allocation3] sm:$0xff]
    %v115 = vld [vmem:[#allocation3 + $0x8] sm:$0xff]
    %118 = vrot.lane.b32.xlu0 %v114, 32
    %v119 = vpop.permute.xlu0 %118
    %120 = vrot.lane.b32.xlu0 %v115, 32
    %v121 = vpop.permute.xlu0 %120
    %vm124 = vcmask 523520
    %125 = vst.msk [vmem:[#allocation2] sm:$0xff] %vm124, %v119
    %126 = vst.msk [vmem:[#allocation2 + $0x8] sm:$0xff] %vm124, %v121
    %vm127 = vcmp.lt.s32.totalorder %v64, 0
    %v128 = vsub.s32 0, %v64
    %v129 = vsel %vm127, %v128, %v64
    %v130 = vshrl.u32 %v129, 3
    %v131 = vand.u32 %v129, 7
    %v132 = vsub.s32 0, %v131
    %v133 = vsel %vm127, %v132, %v131
    %vm134 = vcmp.lt.s32.totalorder %v65, 0
    %v135 = vsub.s32 0, %v65
    %v136 = vsel %vm134, %v135, %v65
    %v137 = vshrl.u32 %v136, 3
    %v138 = vand.u32 %v136, 7
    %v139 = vsub.s32 0, %v138
    %v140 = vsel %vm134, %v139, %v138
    %vm141 = vcmp.ne.s32.totalorder %v133, 0
    %vm142 = vcmp.ne.s32.totalorder %v140, 0
    %vm143 = vcmp.lt.s32.totalorder %v133, 0
    %vm144 = vcmp.lt.s32.totalorder %v140, 0
    %vm145 = vmand %vm143, %vm141
    %vm146 = vmand %vm144, %vm142
    %v147 = vadd.s32 %v133, 8
    %v148 = vadd.s32 %v140, 8
    %v149 = vsel %vm145, %v147, %v133
    %v150 = vsel %vm146, %v148, %v140
    %v151 = vadd.s32 %v149, 1
    %v152 = vadd.s32 %v150, 1
    %vm153 = vcmp.ge.s32.totalorder %v151, 0
    %vm154 = vcmp.ge.s32.totalorder %v152, 0
    %vm155 = vcmp.lt.s32.totalorder %v151, 8
    %vm156 = vcmp.lt.s32.totalorder %v152, 8
    %vm157 = vmand %vm153, %vm155
    %vm158 = vmand %vm154, %vm156
    %v159 = vld [vmem:[#allocation3 + $0x1] sm:$0xff]
    %v160 = vld [vmem:[#allocation3 + $0x9] sm:$0x7f]
    %v161 = vsel %vm157, 1, 0
    %v162 = vsel %vm158, 1, 0
    %vm163 = vcmp.eq.s32.totalorder %v161, 1
    %vm164 = vcmp.eq.s32.totalorder %v162, 1
    %v165 = vsel %vm163, %v159, 0.0
    %v166 = vsel %vm164, %v160, 0.0
    %169 = vrot.lane.b32.xlu0 %v165, 64
    %v170 = vpop.permute.xlu0 %169
    %171 = vrot.lane.b32.xlu0 %v166, 64
    %v172 = vpop.permute.xlu0 %171
    %vm175 = vcmask 785920
    %176 = vst.msk [vmem:[#allocation2] sm:$0xff] %vm175, %v170
    %vm177 = vcmask 784896
    %178 = vst.msk [vmem:[#allocation2 + $0x8] sm:$0x7f] %vm177, %v172
    %vm179 = vcmask 778752
    %180 = vst.msk [vmem:[#allocation2 + $0xf] sm:$0x1] %vm179, 0.0
    %v181 = vld [vmem:[#allocation2] sm:$0xff]
    %v182 = vld [vmem:[#allocation2 + $0x8] sm:$0xff]
    %v183 = vpack.c.bf16 %v182, %v181
    %v184 = vld [vmem:[#allocation6] sm:$0xff]
    %v185 = vld [vmem:[#allocation6 + $0x8] sm:$0xff]
    %v186 = vld [vmem:[#allocation6 + $0x10] sm:$0xff]
    %v187 = vld [vmem:[#allocation6 + $0x18] sm:$0xff]
    %v188 = vld [vmem:[#allocation6 + $0x20] sm:$0xff]
    %v189 = vld [vmem:[#allocation6 + $0x28] sm:$0xff]
    %v190 = vld [vmem:[#allocation6 + $0x30] sm:$0xff]
    %v191 = vld [vmem:[#allocation6 + $0x38] sm:$0xff]
    %v192 = vld [vmem:[#allocation6 + $0x40] sm:$0xff]
    %v193 = vld [vmem:[#allocation6 + $0x48] sm:$0xff]
    %v194 = vld [vmem:[#allocation6 + $0x50] sm:$0xff]
    %v195 = vld [vmem:[#allocation6 + $0x58] sm:$0xff]
    %v196 = vld [vmem:[%s2] sm:$0x3]
    %v198 = vlaneseq
    %v199 = vshrl.u32 %v198, 7
    %v200 = vsub.s32 0, %v199
    %v201 = vrot.slane %v196, %v200
    %v202 = vlaneseq
    %v203 = vshrl.u32 %v202, 7
    %v204 = vsub.s32 1, %v203
    %v205 = vrot.slane %v196, %v204
    %v220 = vunpack.c.l.b16 %v184
    %v221 = vunpack.c.h.b16 %v184
    %v222 = vunpack.c.l.b16 %v185
    %v223 = vunpack.c.h.b16 %v185
    %v224 = vunpack.c.l.b16 %v186
    %v225 = vunpack.c.h.b16 %v186
    %v226 = vunpack.c.l.b16 %v187
    %v227 = vunpack.c.h.b16 %v187
    %v228 = vunpack.c.l.b16 %v188
    %v229 = vunpack.c.h.b16 %v188
    %v230 = vunpack.c.l.b16 %v189
    %v231 = vunpack.c.h.b16 %v189
    %v232 = vunpack.c.l.b16 %v190
    %v233 = vunpack.c.h.b16 %v190
    %v234 = vunpack.c.l.b16 %v191
    %v235 = vunpack.c.h.b16 %v191
    %v236 = vunpack.c.l.b16 %v192
    %v237 = vunpack.c.h.b16 %v192
    %v238 = vunpack.c.l.b16 %v193
    %v239 = vunpack.c.h.b16 %v193
    %v240 = vunpack.c.l.b16 %v194
    %v241 = vunpack.c.h.b16 %v194
    %v242 = vunpack.c.l.b16 %v195
    %v243 = vunpack.c.h.b16 %v195
    %v244 = vpack.c.b16 %v222, %v220
    %v245 = vpack.c.b16 %v223, %v221
    %v246 = vpack.c.b16 %v226, %v224
    %v247 = vpack.c.b16 %v227, %v225
    %v248 = vpack.c.b16 %v230, %v228
    %v249 = vpack.c.b16 %v231, %v229
    %v250 = vpack.c.b16 %v234, %v232
    %v251 = vpack.c.b16 %v235, %v233
    %v252 = vpack.c.b16 %v238, %v236
    %v253 = vpack.c.b16 %v239, %v237
    %v254 = vpack.c.b16 %v242, %v240
    %v255 = vpack.c.b16 %v243, %v241
    %vm268 = vcmask 785408
    %v270 = vsel %vm268, %v183, 0
    %272 = vmatprep.subr.bf16.mxu0 0
    %273 = vmatpush1.bf16.msra.mxu0 0
    %274 = vmatprep.subr.bf16.mxu0 0
    %275 = vmatpush1.bf16.msra.mxu0 0
    %276 = vmatprep.subr.bf16.mxu0 %v255
    %277 = vmatpush1.bf16.msra.mxu0 %v254
    %278 = vmatprep.subr.bf16.mxu0 %v253
    %279 = vmatpush1.bf16.msra.mxu0 %v252
    %280 = vmatprep.subr.bf16.mxu0 %v251
    %281 = vmatpush1.bf16.msra.mxu0 %v250
    %282 = vmatprep.subr.bf16.mxu0 %v249
    %283 = vmatpush1.bf16.msra.mxu0 %v248
    %284 = vmatprep.subr.bf16.mxu0 %v247
    %285 = vmatpush1.bf16.msra.mxu0 %v246
    %286 = vmatprep.subr.bf16.mxu0 %v245
    %287 = vmatpush1.bf16.msra.mxu0 %v244
    %288 = vmatprep.subr.bf16.mxu0 0
    %289 = vmatpush2.bf16.msra.mxu0 0
    %290 = vmatprep.subr.bf16.mxu0 0
    %291 = vmatpush2.bf16.msra.mxu0 0
    %292 = vmatprep.subr.bf16.mxu0 0
    %293 = vmatpush2.bf16.msra.mxu0 0
    %294 = vmatprep.subr.bf16.mxu0 0
    %295 = vmatpush2.bf16.msra.mxu0 0
    %296 = vmatprep.subr.bf16.mxu0 0
    %297 = vmatpush2.bf16.msra.mxu0 0
    %298 = vmatprep.subr.bf16.mxu0 0
    %299 = vmatpush2.bf16.msra.mxu0 0
    %300 = vmatprep.subr.bf16.mxu0 0
    %301 = vmatpush2.bf16.msra.mxu0 0
    %302 = vmatprep.subr.bf16.mxu0 0
    %303 = vmatpush2.bf16.msra.mxu0 0
    %304 = vmatprep.mubr.bf16.mxu0 0
    %305 = vmatmul.mubr.bf16.gmra.mxu0 %v270
    %v306 = vpop.f32.mrf.mxu0
    %v307 = vadd.f32 %v201, %v306
    %v308 = vpop.f32.mrf.mxu0
    %v309 = vadd.f32 %v205, %v308
    %v310 = vpop.f32.mrf.mxu0
    %v311 = vadd.f32 %v201, %v310
    %v312 = vpop.f32.mrf.mxu0
    %v313 = vadd.f32 %v205, %v312
    %314 = vdwg.mxu0
    %v315 = vmax.f32 %v309, 0.0
    %v316 = vmax.f32 %v313, 0.0
    %v317 = vpack.c.bf16 %v316, %v315
    %v318 = vld [vmem:[#allocation8] sm:$0xf]
    %v319 = vld [vmem:[#allocation8 + $0x4] sm:$0xf]
    %v320 = vld [vmem:[#allocation8 + $0x8] sm:$0xf]
    %v321 = vld [vmem:[#allocation8 + $0xc] sm:$0xf]
    %v322 = vld [vmem:[#allocation8 + $0x10] sm:$0xf]
    %v323 = vld [vmem:[#allocation8 + $0x14] sm:$0xf]
    %v324 = vld [vmem:[#allocation8 + $0x18] sm:$0xf]
    %v325 = vld [vmem:[#allocation8 + $0x1c] sm:$0xf]
    %v326 = vld [vmem:[#allocation8 + $0x20] sm:$0xf]
    %v327 = vld [vmem:[#allocation8 + $0x24] sm:$0xf]
    %v328 = vld [vmem:[#allocation8 + $0x28] sm:$0xf]
    %v329 = vld [vmem:[#allocation8 + $0x2c] sm:$0xf]
    %v330 = vld [vmem:[#allocation8 + $0x30] sm:$0xf]
    %v331 = vld [vmem:[#allocation8 + $0x34] sm:$0xf]
    %v332 = vld [vmem:[#allocation8 + $0x38] sm:$0xf]
    %v333 = vld [vmem:[#allocation8 + $0x3c] sm:$0xf]
    %v334 = vld [vmem:[%s4] sm:$0x1]
    %v336 = vlaneseq
    %v337 = vshrl.u32 %v336, 7
    %v338 = vsub.s32 0, %v337
    %v339 = vrot.slane %v334, %v338
    %v357 = vunpack.c.l.b16 %v318
    %v358 = vunpack.c.l.b16 %v319
    %v359 = vunpack.c.l.b16 %v320
    %v360 = vunpack.c.l.b16 %v321
    %v361 = vunpack.c.l.b16 %v322
    %v362 = vunpack.c.l.b16 %v323
    %v363 = vunpack.c.l.b16 %v324
    %v364 = vunpack.c.l.b16 %v325
    %v365 = vunpack.c.l.b16 %v326
    %v366 = vunpack.c.l.b16 %v327
    %v367 = vunpack.c.l.b16 %v328
    %v368 = vunpack.c.l.b16 %v329
    %v369 = vunpack.c.l.b16 %v330
    %v370 = vunpack.c.l.b16 %v331
    %v371 = vunpack.c.l.b16 %v332
    %v372 = vunpack.c.l.b16 %v333
    %v373 = vpack.c.b16 %v358, %v357
    %v374 = vpack.c.b16 %v360, %v359
    %v375 = vpack.c.b16 %v362, %v361
    %v376 = vpack.c.b16 %v364, %v363
    %v377 = vpack.c.b16 %v366, %v365
    %v378 = vpack.c.b16 %v368, %v367
    %v379 = vpack.c.b16 %v370, %v369
    %v380 = vpack.c.b16 %v372, %v371
    %389 = vmatprep.subr.bf16.mxu0 0
    %390 = vmatpush1.bf16.msra.mxu0 %v380
    %391 = vmatprep.subr.bf16.mxu0 0
    %392 = vmatpush1.bf16.msra.mxu0 %v379
    %393 = vmatprep.subr.bf16.mxu0 0
    %394 = vmatpush1.bf16.msra.mxu0 %v378
    %395 = vmatprep.subr.bf16.mxu0 0
    %396 = vmatpush1.bf16.msra.mxu0 %v377
    %397 = vmatprep.subr.bf16.mxu0 0
    %398 = vmatpush1.bf16.msra.mxu0 %v376
    %399 = vmatprep.subr.bf16.mxu0 0
    %400 = vmatpush1.bf16.msra.mxu0 %v375
    %401 = vmatprep.subr.bf16.mxu0 0
    %402 = vmatpush1.bf16.msra.mxu0 %v374
    %403 = vmatprep.subr.bf16.mxu0 0
    %404 = vmatpush1.bf16.msra.mxu0 %v373
    %405 = vmatprep.subr.bf16.mxu0 0
    %406 = vmatpush2.bf16.msra.mxu0 0
    %407 = vmatprep.subr.bf16.mxu0 0
    %408 = vmatpush2.bf16.msra.mxu0 0
    %409 = vmatprep.subr.bf16.mxu0 0
    %410 = vmatpush2.bf16.msra.mxu0 0
    %411 = vmatprep.subr.bf16.mxu0 0
    %412 = vmatpush2.bf16.msra.mxu0 0
    %413 = vmatprep.subr.bf16.mxu0 0
    %414 = vmatpush2.bf16.msra.mxu0 0
    %415 = vmatprep.subr.bf16.mxu0 0
    %416 = vmatpush2.bf16.msra.mxu0 0
    %417 = vmatprep.subr.bf16.mxu0 0
    %418 = vmatpush2.bf16.msra.mxu0 0
    %419 = vmatprep.subr.bf16.mxu0 0
    %420 = vmatpush2.bf16.msra.mxu0 0
    %421 = vmatprep.mubr.bf16.mxu0 0
    %422 = vmatmul.mubr.bf16.gmra.mxu0 %v317
    %v423 = vpop.f32.mrf.mxu0
    %v424 = vadd.f32 %v339, %v423
    %v425 = vpop.f32.mrf.mxu0
    %v426 = vpop.f32.mrf.mxu0
    %v427 = vadd.f32 %v339, %v426
    %v428 = vpop.f32.mrf.mxu0
    %429 = vdwg.mxu0
    %v430 = vadd.f32 %v307, %v424
    %v431 = vadd.f32 %v311, %v427
    %432 = vst [vmem:[#allocation9] sm:$0xff] %v430
    %433 = vst [vmem:[#allocation9 + $0x8] sm:$0xff] %v431
    // Predicated region
    $region34: #{tpu_custom_call.1} parent=1 // pred_check
      _
    $region35: #{tpu_custom_call.1} parent=1 // pred_check_branch
      %435 = sbr.rel (0) target = $region37
    $region36: #{tpu_custom_call.1} parent=1 // pred_region
      %s437 = ssub.s32 256, 256
      %438 = vsyncadd [#allocation5], %s437
      %s439 = sshll.u32 [#allocation9], 4
      %s440 = int_to_ptr.vmem [resolvable:$true] %s439
      %445 = dma.vmem_to_hbm [thread:$0]  %s440, 256, %s5, [#allocation5], 128, 128, 8
    $region37: #{tpu_custom_call.1} parent=1 // pred_fallthru
      _
    // Predicated region
    $region38: #{tpu_custom_call.1} parent=1 // pred_check
      _
    $region39: #{tpu_custom_call.1} parent=1 // pred_check_branch
      %447 = sbr.rel (0) target = $region41
    $region40: #{tpu_custom_call.1} parent=1 // pred_region
      %448 = dma.done [#allocation5], 256
    $region41: #{tpu_custom_call.1} parent=1 // pred_fallthru
      _
    %449 = vsyncpa [#allocation4], 1
    %450 = vsyncpa [#allocation7], 1
    %451 = vsyncpa [#allocation5], 1

</llo_original>
